<compile_context>
chip_gen: v7x
topology: tpu7x:2x2x1
jax: 0.10.0
libtpu: 0.0.40
codegen_flags: <defaults>
</compile_context>

<pallas_src>
import functools

import jax
import jax.numpy as jnp
from jax.experimental import pallas as pl
from jax.experimental.pallas import tpu as pltpu

LANE = 128
SUBLANE = 8


def _round_up(x, m):
    return ((x + m - 1) // m) * m


# ----------------------------- fused Pallas kernel ------------------------------


def _gcn_stack_kernel(adj_ref, x0_ref, w_ref, b_ref, out_ref, x_scr,
                      *, num_layers, l2norm):
    """One grid step == one GCN layer. X stays resident in VMEM scratch across layers."""
    layer = pl.program_id(0)

    @pl.when(layer == 0)
    def _():
        x_scr[...] = x0_ref[...]

    # (Adj @ X) @ W + b  -- both matmuls in bf16 on the MXU, f32 accumulation.
    ax = jnp.dot(adj_ref[...], x_scr[...].astype(jnp.bfloat16),
                 preferred_element_type=jnp.float32)
    h = jnp.dot(ax.astype(jnp.bfloat16), w_ref[0],
                preferred_element_type=jnp.float32) + b_ref[0]
    x_scr[...] = h

    @pl.when(layer == num_layers - 1)
    def _():
        y = h
        if l2norm:
            # F.normalize: x / max(||x||, 1e-12)  ==  x * rsqrt(max(sumsq, 1e-24))
            ss = jnp.sum(y * y, axis=-1, keepdims=True)
            y = y * jax.lax.rsqrt(jnp.maximum(ss, 1e-24))
        out_ref[...] = y.astype(out_ref.dtype)


def gcn_stack_fused(adj_bf16, x0_pad, w_stack_bf16, b_stack, *, l2norm):
    num_layers = w_stack_bf16.shape[0]
    n_pad, feat = x0_pad.shape

    kernel = functools.partial(_gcn_stack_kernel, num_layers=num_layers, l2norm=l2norm)

    flops = num_layers * (2 * n_pad * n_pad * feat + 2 * n_pad * feat * feat)
    bytes_accessed = (adj_bf16.size * 2 + x0_pad.size * 4 +
                      w_stack_bf16.size * 2 + b_stack.size * 4 + n_pad * feat * 4)

    return pl.pallas_call(
        kernel,
        out_shape=jax.ShapeDtypeStruct((n_pad, feat), jnp.float32),
        grid_spec=pltpu.PrefetchScalarGridSpec(
            num_scalar_prefetch=0,
            grid=(num_layers,),
            in_specs=[
                pl.BlockSpec((n_pad, n_pad), lambda l: (0, 0)),      # adj: resident, DMA'd once
                pl.BlockSpec((n_pad, feat), lambda l: (0, 0)),       # x0: resident, DMA'd once
                pl.BlockSpec((1, feat, feat), lambda l: (l, 0, 0)),  # per-layer W, streamed
                pl.BlockSpec((1, 1, feat), lambda l: (l, 0, 0)),     # per-layer b, streamed
            ],
            out_specs=pl.BlockSpec((n_pad, feat), lambda l: (0, 0)),  # written once at the end
            scratch_shapes=[pltpu.VMEM((n_pad, feat), jnp.float32)],
        ),
        compiler_params=pltpu.CompilerParams(
            dimension_semantics=("arbitrary",),          # layers are inherently sequential
            vmem_limit_bytes=32 * 1024 * 1024,
        ),
        cost_estimate=pl.CostEstimate(
            flops=flops,
            transcendentals=n_pad if l2norm else 0,
            bytes_accessed=bytes_accessed,
        ),
    )(adj_bf16, x0_pad, w_stack_bf16, b_stack)


# ------------------------------- JAX glue -----------------------------------


def build_norm_adj(edge_index, num_nodes):
    """Dense symmetric-normalized adjacency with self loops: D^-1/2 (A+I) D^-1/2."""
    src, dst = edge_index[0], edge_index[1]
    a = jnp.zeros((num_nodes, num_nodes), jnp.float32)
    a = a.at[dst, src].add(1.0)  # message flows src -> dst
    a = a + jnp.eye(num_nodes, dtype=jnp.float32)
    deg = jnp.sum(a, axis=1)
    d_inv_sqrt = jnp.where(deg > 0, 1.0 / jnp.sqrt(deg), 0.0)
    return d_inv_sqrt[:, None] * a * d_inv_sqrt[None, :]


def init_stage_params(key, dim_in, dim_out, num_layers):
    """Deterministic Glorot-uniform weights, zero bias (GCNConv default)."""
    params = []
    for i in range(num_layers):
        d_in = dim_in if i == 0 else dim_out
        key, wkey = jax.random.split(key)
        limit = jnp.sqrt(6.0 / (d_in + dim_out))
        w = jax.random.uniform(wkey, (d_in, dim_out), jnp.float32, -limit, limit)
        b = jnp.zeros((dim_out,), jnp.float32)
        params.append((w, b))
    return params


def gnn_stack_stage_forward(node_feature, edge_index, params, l2norm=True):
    n, d_in = node_feature.shape
    num_layers = len(params)
    d_out = params[0][0].shape[1]

    feat = _round_up(max(d_in, d_out), LANE)   # lane-dense padded feature width
    n_pad = _round_up(n, SUBLANE)              # sublane-aligned node count

    adj = build_norm_adj(edge_index, n)
    adj_bf16 = jnp.zeros((n_pad, n_pad), jnp.float32).at[:n, :n].set(adj).astype(jnp.bfloat16)

    x0 = jnp.zeros((n_pad, feat), jnp.float32).at[:n, :d_in].set(node_feature)
    w_stack = jnp.zeros((num_layers, feat, feat), jnp.float32)
    b_stack = jnp.zeros((num_layers, 1, feat), jnp.float32)
    for i, (w, b) in enumerate(params):
        w_stack = w_stack.at[i, : w.shape[0], : w.shape[1]].set(w)
        b_stack = b_stack.at[i, 0, : b.shape[0]].set(b)

    y = gcn_stack_fused(adj_bf16, x0, w_stack.astype(jnp.bfloat16), b_stack, l2norm=l2norm)
    return y[:n, :d_out]


def reference_forward(node_feature, edge_index, params, l2norm=True):
    """Pure-JAX f32 reference matching the PyTorch module semantics."""
    adj = build_norm_adj(edge_index, node_feature.shape[0])
    x = node_feature
    for w, b in params:
        x = adj @ (x @ w) + b
    if l2norm:
        nrm = jnp.maximum(jnp.sqrt(jnp.sum(x * x, axis=-1, keepdims=True)), 1e-12)
        x = x / nrm
    return x


# ------------------------------- main ----------------------------------------


if __name__ == "__main__":
    num_nodes = 128
    num_edges = 256
    dim_in = 16
    dim_out = 32
    num_layers = 3

    key = jax.random.PRNGKey(0)
    k_feat, k_edge, k_param = jax.random.split(key, 3)

    node_feature = jax.random.normal(k_feat, (num_nodes, dim_in), jnp.float32)
    edge_index = jax.random.randint(k_edge, (2, num_edges), 0, num_nodes, jnp.int32)
    params = init_stage_params(k_param, dim_in, dim_out, num_layers)

    out = gnn_stack_stage_forward(node_feature, edge_index, params, l2norm=True)
    out = jax.block_until_ready(out)

    assert out.shape == (num_nodes, dim_out)
    assert bool(jnp.all(jnp.isfinite(out)))

    # Numerical check against the f32 reference (bf16 MXU inputs, f32 accumulation).
    ref = reference_forward(node_feature, edge_index, params, l2norm=True)
    max_err = float(jnp.max(jnp.abs(out - ref)))
    assert max_err < 5e-2, f"max abs error vs reference too large: {max_err}"

    print("KERNEL_OK")
</pallas_src>

<mosaic_0001>
module attributes {stable_mosaic.version = 11 : i64} {
  func.func @_gcn_stack_kernel(%arg0: i32, %arg1: memref<128x128xbf16, #tpu.memory_space<vmem>>, %arg2: memref<128x128xf32, #tpu.memory_space<vmem>>, %arg3: memref<1x128x128xbf16, #tpu.memory_space<vmem>>, %arg4: memref<1x1x128xf32, #tpu.memory_space<vmem>>, %arg5: memref<128x128xf32, #tpu.memory_space<vmem>>, %arg6: memref<128x128xf32, #tpu.memory_space<vmem>>) attributes {dimension_semantics = [#tpu.dimension_semantics<arbitrary>], iteration_bounds = array<i64: 3>, scalar_prefetch = 0 : i64, scratch_operands = 1 : i64, tpu.core_type = #tpu.core_type<tc>, window_params = [{pipeline_mode = #tpu.pipeline_mode<synchronous>, transform_indices = @transform_0, window_bounds = array<i64: 128, 128>}, {pipeline_mode = #tpu.pipeline_mode<synchronous>, transform_indices = @transform_1, window_bounds = array<i64: 128, 128>}, {transform_indices = @transform_2, window_bounds = array<i64: 1, 128, 128>}, {transform_indices = @transform_3, window_bounds = array<i64: 1, 1, 128>}, {pipeline_mode = #tpu.pipeline_mode<synchronous>, transform_indices = @transform_4, window_bounds = array<i64: 128, 128>}]} {
    %c0_i32 = arith.constant 0 : i32
    %0 = arith.cmpi eq, %arg0, %c0_i32 : i32
    %1 = arith.extui %0 : i1 to i32
    %c0_i32_0 = arith.constant 0 : i32
    %2 = arith.cmpi ne, %1, %c0_i32_0 : i32
    scf.if %2 {
      %c0_14 = arith.constant 0 : index
      %c0_15 = arith.constant 0 : index
      %19 = vector.load %arg2[%c0_14, %c0_15] : memref<128x128xf32, #tpu.memory_space<vmem>>, vector<128x128xf32>
      %c0_16 = arith.constant 0 : index
      %c0_17 = arith.constant 0 : index
      %20 = vector.load %arg6[%c0_16, %c0_17] : memref<128x128xf32, #tpu.memory_space<vmem>>, vector<128x128xf32>
      tpu.vector_store %arg6[%c0_16, %c0_17], %19 {strides = array<i32>} : memref<128x128xf32, #tpu.memory_space<vmem>>, vector<128x128xf32>,
    } else {
    }
    %c0 = arith.constant 0 : index
    %c0_1 = arith.constant 0 : index
    %3 = vector.load %arg1[%c0, %c0_1] : memref<128x128xbf16, #tpu.memory_space<vmem>>, vector<128x128xbf16>
    %c0_2 = arith.constant 0 : index
    %c0_3 = arith.constant 0 : index
    %4 = vector.load %arg6[%c0_2, %c0_3] : memref<128x128xf32, #tpu.memory_space<vmem>>, vector<128x128xf32>
    %5 = arith.truncf %4 : vector<128x128xf32> to vector<128x128xbf16>
    %cst = arith.constant dense<0.000000e+00> : vector<128x128xf32>
    %6 = tpu.matmul %3, %5, %cst {dimension_numbers = #tpu.dot_dimension_numbers<[1], [0], [0], [1], [0, 0, 1, 1], [], []>} : vector<128x128xbf16>, vector<128x128xbf16>, vector<128x128xf32> -> vector<128x128xf32>
    %7 = arith.truncf %6 : vector<128x128xf32> to vector<128x128xbf16>
    %c0_4 = arith.constant 0 : index
    %c0_5 = arith.constant 0 : index
    %c0_6 = arith.constant 0 : index
    %8 = vector.load %arg3[%c0_4, %c0_5, %c0_6] : memref<1x128x128xbf16, #tpu.memory_space<vmem>>, vector<1x128x128xbf16>
    %9 = vector.shape_cast %8 : vector<1x128x128xbf16> to vector<128x128xbf16>
    %cst_7 = arith.constant dense<0.000000e+00> : vector<128x128xf32>
    %10 = tpu.matmul %7, %9, %cst_7 {dimension_numbers = #tpu.dot_dimension_numbers<[1], [0], [0], [1], [0, 0, 1, 1], [], []>} : vector<128x128xbf16>, vector<128x128xbf16>, vector<128x128xf32> -> vector<128x128xf32>
    %c0_8 = arith.constant 0 : index
    %c0_9 = arith.constant 0 : index
    %c0_10 = arith.constant 0 : index
    %11 = vector.load %arg4[%c0_8, %c0_9, %c0_10] : memref<1x1x128xf32, #tpu.memory_space<vmem>>, vector<1x1x128xf32>
    %12 = vector.shape_cast %11 : vector<1x1x128xf32> to vector<1x128xf32>
    %13 = vector.broadcast %12 : vector<1x128xf32> to vector<128x128xf32>
    %14 = arith.addf %10, %13 : vector<128x128xf32>
    %c0_11 = arith.constant 0 : index
    %c0_12 = arith.constant 0 : index
    %15 = vector.load %arg6[%c0_11, %c0_12] : memref<128x128xf32, #tpu.memory_space<vmem>>, vector<128x128xf32>
    tpu.vector_store %arg6[%c0_11, %c0_12], %14 {strides = array<i32>} : memref<128x128xf32, #tpu.memory_space<vmem>>, vector<128x128xf32>,
    %c2_i32 = arith.constant 2 : i32
    %16 = arith.cmpi eq, %arg0, %c2_i32 : i32
    %17 = arith.extui %16 : i1 to i32
    %c0_i32_13 = arith.constant 0 : i32
    %18 = arith.cmpi ne, %17, %c0_i32_13 : i32
    scf.if %18 {
      %19 = arith.mulf %14, %14 : vector<128x128xf32>
      %cst_14 = arith.constant dense<0.000000e+00> : vector<128xf32>
      %20 = vector.multi_reduction <add>, %19, %cst_14 [1] : vector<128x128xf32> to vector<128xf32>
      %21 = vector.shape_cast %20 : vector<128xf32> to vector<128x1xf32>
      %cst_15 = arith.constant 1.000000e-24 : f32
      %22 = vector.broadcast %cst_15 : f32 to vector<128x1xf32>
      %23 = arith.maximumf %21, %22 : vector<128x1xf32>
      %24 = math.rsqrt %23 : vector<128x1xf32>
      %25 = vector.broadcast %24 : vector<128x1xf32> to vector<128x128xf32>
      %26 = arith.mulf %14, %25 : vector<128x128xf32>
      %c0_16 = arith.constant 0 : index
      %c0_17 = arith.constant 0 : index
      %27 = vector.load %arg5[%c0_16, %c0_17] : memref<128x128xf32, #tpu.memory_space<vmem>>, vector<128x128xf32>
      tpu.vector_store %arg5[%c0_16, %c0_17], %26 {strides = array<i32>} : memref<128x128xf32, #tpu.memory_space<vmem>>, vector<128x128xf32>,
    } else {
    }
    return
  }
  func.func @transform_0(%arg0: i32) -> (i32, i32) {
    %c0_i32 = arith.constant 0 : i32
    %c0_i32_0 = arith.constant 0 : i32
    %c0_i32_1 = arith.constant 0 : i32
    return %c0_i32, %c0_i32_0 : i32, i32
  }
  func.func @transform_1(%arg0: i32) -> (i32, i32) {
    %c0_i32 = arith.constant 0 : i32
    %c0_i32_0 = arith.constant 0 : i32
    %c0_i32_1 = arith.constant 0 : i32
    return %c0_i32, %c0_i32_0 : i32, i32
  }
  func.func @transform_2(%arg0: i32) -> (i32, i32, i32) {
    %c0_i32 = arith.constant 0 : i32
    %c0_i32_0 = arith.constant 0 : i32
    %c0_i32_1 = arith.constant 0 : i32
    return %arg0, %c0_i32, %c0_i32_0 : i32, i32, i32
  }
  func.func @transform_3(%arg0: i32) -> (i32, i32, i32) {
    %c0_i32 = arith.constant 0 : i32
    %c0_i32_0 = arith.constant 0 : i32
    %c0_i32_1 = arith.constant 0 : i32
    return %arg0, %c0_i32, %c0_i32_0 : i32, i32, i32
  }
  func.func @transform_4(%arg0: i32) -> (i32, i32) {
    %c0_i32 = arith.constant 0 : i32
    %c0_i32_0 = arith.constant 0 : i32
    %c0_i32_1 = arith.constant 0 : i32
    return %c0_i32, %c0_i32_0 : i32, i32
  }
}

</mosaic_0001>

<llo_original>
// kernel: tpu_custom_call.1
$region0: #{tpu_custom_call.1}
  #allocation0 [shape = 'u32[]', space=smem, size = 0x4, offset = 0x4, fixed_abs, tag = 'smem constant byte address 0x4 - core index']
  #allocation1 [shape = 'u32[144,128]{1,0:T(1,128)}', space=vmem, size = 0x12000, scoped, tag = 'internal scratch']
  #allocation2 [shape = 'f32[128,128]{1,0:T(8,128)}', space=vmem, size = 0x10000, scoped, tag = 'scratch operand']
  %s0 = inlined_call_operand.hbm [shape: bf16[128,128], index: 0, kind: input, shape index: {}]
  %s1 = inlined_call_operand.hbm [shape: f32[128,128], index: 1, kind: input, shape index: {}]
  %s2 = inlined_call_operand.hbm [shape: bf16[3,128,128], index: 2, kind: input, shape index: {}]
  %s3 = inlined_call_operand.vmem [shape: f32[3,1,128], index: 3, kind: input, shape index: {}]
  %s4 = inlined_call_operand.hbm [shape: f32[128,128], index: 4, kind: output, shape index: {}]
  %s5 = sld [smem:[#allocation0]]
  $region69: #{tpu_custom_call.1} parent=0
    _
  %s7 = ssub.s32 1, %s5
  %s8 = scalar_select 0, %s7, %s5
  $region1: #{tpu_custom_call.1} parent=0
    #allocation3 [shape = 'u8[32768]{0}', space=vmem, size = 0x8000, scoped, tag = 'input window, operand 0, single buffered']
    #allocation4 [shape = 's32[2]{0}', space=sflag, size = 0x8, scoped, tag = 'scoped memory for tpu_custom_call.1']
    #allocation5 [shape = 's32[2]{0}', space=sflag, size = 0x8, scoped, tag = 'scoped memory for tpu_custom_call.1']
    #allocation6 [shape = 'u8[65536]{0}', space=vmem, size = 0x10000, scoped, tag = 'input window, operand 1, single buffered']
    #allocation7 [shape = 's32[1]{0}', space=sflag, size = 0x4, scoped, tag = 'scoped memory for tpu_custom_call.1']
    #allocation8 [shape = 'u8[65536]{0}', space=vmem, size = 0x10000, scoped, tag = 'input window, operand 2']
    #allocation9 [shape = 'u8[65536]{0}', space=vmem, size = 0x10000, scoped, tag = 'output window, operand 0, single buffered']
    %9 = vsyncpa [#allocation4], 0
    %10 = vsyncpa [#allocation7], 0
    %11 = vsyncpa [#allocation5], 0
    loop: start=0, step=1, limit=5
    $region2: #{tpu_custom_call.1} parent=1 // loop_pre_header
      _
    $region3: #{tpu_custom_call.1} parent=1 // loop_header
      %s13 = sphi 0, %s17
      %p14 = scmp.ge.s32.totalorder %s13, 5
      %s21 = sphi 0, %s21
      %s23 = sphi 0, %s21
      %s24 = sphi 0, %s23
      %s38 = sphi 0, %s24
      %s42 = sphi 0, %s42
      %s44 = sphi 0, %s42
      %s45 = sphi 0, %s44
      %s59 = sphi 0, %s45
      %s65 = sphi 0, %s67
      %s68 = sphi 0, %s65
      %s69 = sphi 0, %s68
      %s85 = sphi 0, %s69
      %s91 = sphi 0, %s93
      %s94 = sphi 0, %s91
      %s95 = sphi 0, %s94
      %s111 = sphi 0, %s95
      %s115 = sphi 0, %s115
      %s117 = sphi 0, %s115
      %s118 = sphi 0, %s117
      %s132 = sphi 0, %s118
    $region4: #{tpu_custom_call.1} parent=1 // loop_header_branch
      %16 = sbr.rel (%p14) target = $region8
    $region5: #{tpu_custom_call.1} parent=1 // loop_body
      %s18 = ssub.s32 %s13, 1
      %s19 = ssub.s32 %s13, 2
      %s20 = sadd.s32 %s13, 1
      %s22 = sadd.s32 %s21, 1
      %p25 = scmp.eq.s32.totalorder %s13, 2
      %p26 = scmp.ne.s32.totalorder %s21, %s23
      %p27 = scmp.eq.s32.totalorder %s13, 0
      %p28 = por %p26, %p27
      %p29 = scmp.ne.s32.totalorder %s21, %s23
      %p30 = scmp.eq.s32.totalorder %s18, 2
      %p31 = por %p29, %p30
      %p32 = scmp.ne.s32.totalorder %s23, %s24
      %p33 = scmp.eq.s32.totalorder %s18, 0
      %p34 = por %p32, %p33
      %p35 = scmp.ne.s32.totalorder %s23, %s24
      %p36 = scmp.eq.s32.totalorder %s19, 2
      %p37 = por %p35, %p36
      %p39 = scmp.ne.s32.totalorder %s24, %s38
      %p40 = scmp.eq.s32.totalorder %s19, 0
      %p41 = por %p39, %p40
      %s43 = sadd.s32 %s42, 1
      %p46 = scmp.eq.s32.totalorder %s13, 2
      %p47 = scmp.ne.s32.totalorder %s42, %s44
      %p48 = scmp.eq.s32.totalorder %s13, 0
      %p49 = por %p47, %p48
      %p50 = scmp.ne.s32.totalorder %s42, %s44
      %p51 = scmp.eq.s32.totalorder %s18, 2
      %p52 = por %p50, %p51
      %p53 = scmp.ne.s32.totalorder %s44, %s45
      %p54 = scmp.eq.s32.totalorder %s18, 0
      %p55 = por %p53, %p54
      %p56 = scmp.ne.s32.totalorder %s44, %s45
      %p57 = scmp.eq.s32.totalorder %s19, 2
      %p58 = por %p56, %p57
      %p60 = scmp.ne.s32.totalorder %s45, %s59
      %p61 = scmp.eq.s32.totalorder %s19, 0
      %p62 = por %p60, %p61
      %s63 = ssub.s32 %s13, %s20
      %p64 = scmp.eq.s32.totalorder %s63, 0
      %s66 = sadd.s32 %s65, 1
      %s67 = scalar_select %p64, %s65, %s66
      %p70 = pneg %p64
      %p71 = scmp.eq.s32.totalorder %s13, 2
      %p72 = por %p70, %p71
      %p73 = scmp.ne.s32.totalorder %s65, %s68
      %p74 = scmp.eq.s32.totalorder %s13, 0
      %p75 = por %p73, %p74
      %p76 = scmp.ne.s32.totalorder %s65, %s68
      %p77 = scmp.eq.s32.totalorder %s18, 2
      %p78 = por %p76, %p77
      %p79 = scmp.ne.s32.totalorder %s68, %s69
      %p80 = scmp.eq.s32.totalorder %s18, 0
      %p81 = por %p79, %p80
      %p82 = scmp.ne.s32.totalorder %s68, %s69
      %p83 = scmp.eq.s32.totalorder %s19, 2
      %p84 = por %p82, %p83
      %p86 = scmp.ne.s32.totalorder %s69, %s85
      %p87 = scmp.eq.s32.totalorder %s19, 0
      %p88 = por %p86, %p87
      %s89 = ssub.s32 %s13, %s20
      %p90 = scmp.eq.s32.totalorder %s89, 0
      %s92 = sadd.s32 %s91, 1
      %s93 = scalar_select %p90, %s91, %s92
      %p96 = pneg %p90
      %p97 = scmp.eq.s32.totalorder %s13, 2
      %p98 = por %p96, %p97
      %p99 = scmp.ne.s32.totalorder %s91, %s94
      %p100 = scmp.eq.s32.totalorder %s13, 0
      %p101 = por %p99, %p100
      %p102 = scmp.ne.s32.totalorder %s91, %s94
      %p103 = scmp.eq.s32.totalorder %s18, 2
      %p104 = por %p102, %p103
      %p105 = scmp.ne.s32.totalorder %s94, %s95
      %p106 = scmp.eq.s32.totalorder %s18, 0
      %p107 = por %p105, %p106
      %p108 = scmp.ne.s32.totalorder %s94, %s95
      %p109 = scmp.eq.s32.totalorder %s19, 2
      %p110 = por %p108, %p109
      %p112 = scmp.ne.s32.totalorder %s95, %s111
      %p113 = scmp.eq.s32.totalorder %s19, 0
      %p114 = por %p112, %p113
      %s116 = sadd.s32 %s115, 1
      %p119 = scmp.eq.s32.totalorder %s13, 2
      %p120 = scmp.ne.s32.totalorder %s115, %s117
      %p121 = scmp.eq.s32.totalorder %s13, 0
      %p122 = por %p120, %p121
      %p123 = scmp.ne.s32.totalorder %s115, %s117
      %p124 = scmp.eq.s32.totalorder %s18, 2
      %p125 = por %p123, %p124
      %p126 = scmp.ne.s32.totalorder %s117, %s118
      %p127 = scmp.eq.s32.totalorder %s18, 0
      %p128 = por %p126, %p127
      %p129 = scmp.ne.s32.totalorder %s117, %s118
      %p130 = scmp.eq.s32.totalorder %s19, 2
      %p131 = por %p129, %p130
      %p133 = scmp.ne.s32.totalorder %s118, %s132
      %p134 = scmp.eq.s32.totalorder %s19, 0
      %p135 = por %p133, %p134
      %p136 = scmp.le.s32.totalorder 1, %s13
      %p137 = scmp.lt.s32.totalorder %s13, 4
      %p138 = pnand %p136, %p137
      %p139 = pneg %p138
      // Predicated region
      $region9: #{tpu_custom_call.1} parent=5 // pred_check
        _
      $region10: #{tpu_custom_call.1} parent=5 // pred_check_branch
        %141 = sbr.rel (%p138) target = $region12
      $region11: #{tpu_custom_call.1} parent=5 // pred_region
        %s142 = ssub.s32 %s13, 1
        // Predicated region
        $region13: #{tpu_custom_call.1} parent=11 // pred_check
          %p143 = pneg %p34
        $region14: #{tpu_custom_call.1} parent=11 // pred_check_branch
          %145 = sbr.rel (%p143) target = $region16
        $region15: #{tpu_custom_call.1} parent=11 // pred_region
          %s147 = ssub.s32 1024, 1024
          %148 = vsyncadd [#allocation4], %s147
          %s149 = sshll.u32 [#allocation3], 4
          %s150 = int_to_ptr.vmem [resolvable:$true] %s149
          %155 = dma.hbm_to_vmem [thread:$0]  %s0, 1024, %s150, [#allocation4], 64, 64, 4
        $region16: #{tpu_custom_call.1} parent=11 // pred_fallthru
          _
        // Predicated region
        $region17: #{tpu_custom_call.1} parent=11 // pred_check
          %p156 = pneg %p55
        $region18: #{tpu_custom_call.1} parent=11 // pred_check_branch
          %158 = sbr.rel (%p156) target = $region20
        $region19: #{tpu_custom_call.1} parent=11 // pred_region
          %s160 = ssub.s32 2048, 2048
          %161 = vsyncadd [#allocation7], %s160
          %s162 = sshll.u32 [#allocation6], 4
          %s163 = int_to_ptr.vmem [resolvable:$true] %s162
          %168 = dma.hbm_to_vmem [thread:$0]  %s1, 2048, %s163, [#allocation7], 128, 128, 8
        $region20: #{tpu_custom_call.1} parent=11 // pred_fallthru
          _
      $region12: #{tpu_custom_call.1} parent=5 // pred_fallthru
        _
      %p169 = scmp.lt.s32.totalorder %s13, 3
      // Predicated region
      $region21: #{tpu_custom_call.1} parent=5 // pred_check
        %p170 = pneg %p169
      $region22: #{tpu_custom_call.1} parent=5 // pred_check_branch
        %172 = sbr.rel (%p170) target = $region24
      $region23: #{tpu_custom_call.1} parent=5 // pred_region
        // Predicated region
        $region25: #{tpu_custom_call.1} parent=23 // pred_check
          %p173 = pneg %p75
        $region26: #{tpu_custom_call.1} parent=23 // pred_check_branch
          %175 = sbr.rel (%p173) target = $region28
        $region27: #{tpu_custom_call.1} parent=23 // pred_region
          %s176 = sand.u32 %s13, 1
          %s177 = scalar_lea.sflag [#allocation4], %s176
          %s178 = sand.u32 %s65, 1
          %s179 = smul.addr %s178, 64
          %s180 = scalar_lea.vmem [#allocation8], %s179
          %s182 = ssub.s32 1024, 1024
          %183 = vsyncadd %s177, %s182
          %s184 = smul.addr %s13, 16
          %s185 = smul.addr %s184, 64
          %s186 = scalar_lea.hbm %s2, %s185
          %s187 = sshll.u32 %s180, 4
          %s188 = int_to_ptr.vmem [resolvable:$true] %s187
          %193 = dma.hbm_to_vmem [thread:$0]  %s186, 1024, %s188, %s177, 64, 64, 4
        $region28: #{tpu_custom_call.1} parent=23 // pred_fallthru
          _
        // Predicated region
        $region29: #{tpu_custom_call.1} parent=23 // pred_check
          %p194 = pneg %p101
        $region30: #{tpu_custom_call.1} parent=23 // pred_check_branch
          %196 = sbr.rel (%p194) target = $region32
        $region31: #{tpu_custom_call.1} parent=23 // pred_region
          %p197 = scmp.lt.s32.totalorder %s13, 2
          %s198 = scalar_select %p197, %s13, 2
          %s199 = scalar_lea.vmem %s3, %s198
        $region32: #{tpu_custom_call.1} parent=23 // pred_fallthru
          _
      $region24: #{tpu_custom_call.1} parent=5 // pred_fallthru
        _
      %p200 = scmp.le.s32.totalorder 1, %s13
      %p201 = scmp.lt.s32.totalorder %s13, 4
      %p202 = pnand %p200, %p201
      %p203 = pneg %p202
      // Predicated region
      $region33: #{tpu_custom_call.1} parent=5 // pred_check
        _
      $region34: #{tpu_custom_call.1} parent=5 // pred_check_branch
        %205 = sbr.rel (%p202) target = $region36
      $region35: #{tpu_custom_call.1} parent=5 // pred_region
        %s206 = ssub.s32 %s13, 1
        // Predicated region
        $region37: #{tpu_custom_call.1} parent=35 // pred_check
          %p207 = pneg %p34
        $region38: #{tpu_custom_call.1} parent=35 // pred_check_branch
          %209 = sbr.rel (%p207) target = $region40
        $region39: #{tpu_custom_call.1} parent=35 // pred_region
          %210 = dma.done [#allocation4], 1024
        $region40: #{tpu_custom_call.1} parent=35 // pred_fallthru
          _
        // Predicated region
        $region41: #{tpu_custom_call.1} parent=35 // pred_check
          %p211 = pneg %p55
        $region42: #{tpu_custom_call.1} parent=35 // pred_check_branch
          %213 = sbr.rel (%p211) target = $region44
        $region43: #{tpu_custom_call.1} parent=35 // pred_region
          %214 = dma.done [#allocation7], 2048
        $region44: #{tpu_custom_call.1} parent=35 // pred_fallthru
          _
        %s215 = sand.u32 %s18, 1
        %s216 = scalar_lea.sflag [#allocation4], %s215
        %s217 = sand.u32 %s68, 1
        %s218 = smul.addr %s217, 64
        %s219 = scalar_lea.vmem [#allocation8], %s218
        // Predicated region
        $region45: #{tpu_custom_call.1} parent=35 // pred_check
          %p220 = pneg %p81
        $region46: #{tpu_custom_call.1} parent=35 // pred_check_branch
          %222 = sbr.rel (%p220) target = $region48
        $region47: #{tpu_custom_call.1} parent=35 // pred_region
          %223 = dma.done %s216, 1024
        $region48: #{tpu_custom_call.1} parent=35 // pred_fallthru
          _
        %p224 = pneg %p34
        %p225 = pneg %p31
        %p226 = pneg %p55
        %p227 = pneg %p52
        %s228 = sand.u32 %s18, 1
        %s229 = scalar_lea.sflag [#allocation4], %s228
        %s230 = sand.u32 %s68, 1
        %s231 = smul.addr %s230, 64
        %s232 = scalar_lea.vmem [#allocation8], %s231
        %p233 = pneg %p81
        %p234 = pneg %p78
        %p235 = scmp.lt.s32.totalorder %s18, 2
        %s236 = scalar_select %p235, %s18, 2
        %s237 = scalar_lea.vmem %s3, %s236
        %p238 = pneg %p107
        %p239 = pneg %p104
        %p240 = pneg %p128
        %p241 = pneg %p125
        %p242 = scmp.lt.s32.totalorder %s18, 2
        %s243 = scalar_select %p242, %s18, 2
        %s244 = scalar_lea.vmem %s3, %s243
        %p246 = scmp.eq.s32.totalorder %s18, 0
        // Predicated region
        $region49: #{tpu_custom_call.1} parent=35 // pred_check
          %p247 = pneg %p246
        $region50: #{tpu_custom_call.1} parent=35 // pred_check_branch
          %249 = sbr.rel (%p247) target = $region52
        $region51: #{tpu_custom_call.1} parent=35 // pred_region
          %v250 = vld [vmem:[#allocation6] sm:$0xff]
          %v251 = vld [vmem:[#allocation6 + $0x8] sm:$0xff]
          %v252 = vld [vmem:[#allocation6 + $0x10] sm:$0xff]
          %v253 = vld [vmem:[#allocation6 + $0x18] sm:$0xff]
          %v254 = vld [vmem:[#allocation6 + $0x20] sm:$0xff]
          %v255 = vld [vmem:[#allocation6 + $0x28] sm:$0xff]
          %v256 = vld [vmem:[#allocation6 + $0x30] sm:$0xff]
          %v257 = vld [vmem:[#allocation6 + $0x38] sm:$0xff]
          %v258 = vld [vmem:[#allocation6 + $0x40] sm:$0xff]
          %v259 = vld [vmem:[#allocation6 + $0x48] sm:$0xff]
          %v260 = vld [vmem:[#allocation6 + $0x50] sm:$0xff]
          %v261 = vld [vmem:[#allocation6 + $0x58] sm:$0xff]
          %v262 = vld [vmem:[#allocation6 + $0x60] sm:$0xff]
          %v263 = vld [vmem:[#allocation6 + $0x68] sm:$0xff]
          %v264 = vld [vmem:[#allocation6 + $0x70] sm:$0xff]
          %v265 = vld [vmem:[#allocation6 + $0x78] sm:$0xff]
          %266 = vst [vmem:[#allocation2] sm:$0xff] %v250
          %267 = vst [vmem:[#allocation2 + $0x8] sm:$0xff] %v251
          %268 = vst [vmem:[#allocation2 + $0x10] sm:$0xff] %v252
          %269 = vst [vmem:[#allocation2 + $0x18] sm:$0xff] %v253
          %270 = vst [vmem:[#allocation2 + $0x20] sm:$0xff] %v254
          %271 = vst [vmem:[#allocation2 + $0x28] sm:$0xff] %v255
          %272 = vst [vmem:[#allocation2 + $0x30] sm:$0xff] %v256
          %273 = vst [vmem:[#allocation2 + $0x38] sm:$0xff] %v257
          %274 = vst [vmem:[#allocation2 + $0x40] sm:$0xff] %v258
          %275 = vst [vmem:[#allocation2 + $0x48] sm:$0xff] %v259
          %276 = vst [vmem:[#allocation2 + $0x50] sm:$0xff] %v260
          %277 = vst [vmem:[#allocation2 + $0x58] sm:$0xff] %v261
          %278 = vst [vmem:[#allocation2 + $0x60] sm:$0xff] %v262
          %279 = vst [vmem:[#allocation2 + $0x68] sm:$0xff] %v263
          %280 = vst [vmem:[#allocation2 + $0x70] sm:$0xff] %v264
          %281 = vst [vmem:[#allocation2 + $0x78] sm:$0xff] %v265
        $region52: #{tpu_custom_call.1} parent=35 // pred_fallthru
          _
        %v282 = vld [vmem:[#allocation3] sm:$0xf]
        %v283 = vld [vmem:[#allocation3 + $0x4] sm:$0xf]
        %v284 = vld [vmem:[#allocation3 + $0x8] sm:$0xf]
        %v285 = vld [vmem:[#allocation3 + $0xc] sm:$0xf]
        %v286 = vld [vmem:[#allocation3 + $0x10] sm:$0xf]
        %v287 = vld [vmem:[#allocation3 + $0x14] sm:$0xf]
        %v288 = vld [vmem:[#allocation3 + $0x18] sm:$0xf]
        %v289 = vld [vmem:[#allocation3 + $0x1c] sm:$0xf]
        %v290 = vld [vmem:[#allocation3 + $0x20] sm:$0xf]
        %v291 = vld [vmem:[#allocation3 + $0x24] sm:$0xf]
        %v292 = vld [vmem:[#allocation3 + $0x28] sm:$0xf]
        %v293 = vld [vmem:[#allocation3 + $0x2c] sm:$0xf]
        %v294 = vld [vmem:[#allocation3 + $0x30] sm:$0xf]
        %v295 = vld [vmem:[#allocation3 + $0x34] sm:$0xf]
        %v296 = vld [vmem:[#allocation3 + $0x38] sm:$0xf]
        %v297 = vld [vmem:[#allocation3 + $0x3c] sm:$0xf]
        %v298 = vld [vmem:[#allocation2] sm:$0xff]
        %v299 = vld [vmem:[#allocation2 + $0x8] sm:$0xff]
        %v300 = vld [vmem:[#allocation2 + $0x10] sm:$0xff]
        %v301 = vld [vmem:[#allocation2 + $0x18] sm:$0xff]
        %v302 = vld [vmem:[#allocation2 + $0x20] sm:$0xff]
        %v303 = vld [vmem:[#allocation2 + $0x28] sm:$0xff]
        %v304 = vld [vmem:[#allocation2 + $0x30] sm:$0xff]
        %v305 = vld [vmem:[#allocation2 + $0x38] sm:$0xff]
        %v306 = vld [vmem:[#allocation2 + $0x40] sm:$0xff]
        %v307 = vld [vmem:[#allocation2 + $0x48] sm:$0xff]
        %v308 = vld [vmem:[#allocation2 + $0x50] sm:$0xff]
        %v309 = vld [vmem:[#allocation2 + $0x58] sm:$0xff]
        %v310 = vld [vmem:[#allocation2 + $0x60] sm:$0xff]
        %v311 = vld [vmem:[#allocation2 + $0x68] sm:$0xff]
        %v312 = vld [vmem:[#allocation2 + $0x70] sm:$0xff]
        %v313 = vld [vmem:[#allocation2 + $0x78] sm:$0xff]
        %v314 = vpack.c.bf16 %v299, %v298
        %v315 = vpack.c.bf16 %v301, %v300
        %v316 = vpack.c.bf16 %v303, %v302
        %v317 = vpack.c.bf16 %v305, %v304
        %v318 = vpack.c.bf16 %v307, %v306
        %v319 = vpack.c.bf16 %v309, %v308
        %v320 = vpack.c.bf16 %v311, %v310
        %v321 = vpack.c.bf16 %v313, %v312
        %v338 = vunpack.c.l.b16 %v282
        %v339 = vunpack.c.l.b16 %v283
        %v340 = vunpack.c.l.b16 %v284
        %v341 = vunpack.c.l.b16 %v285
        %v342 = vunpack.c.l.b16 %v286
        %v343 = vunpack.c.l.b16 %v287
        %v344 = vunpack.c.l.b16 %v288
        %v345 = vunpack.c.l.b16 %v289
        %v346 = vunpack.c.l.b16 %v290
        %v347 = vunpack.c.l.b16 %v291
        %v348 = vunpack.c.l.b16 %v292
        %v349 = vunpack.c.l.b16 %v293
        %v350 = vunpack.c.l.b16 %v294
        %v351 = vunpack.c.l.b16 %v295
        %v352 = vunpack.c.l.b16 %v296
        %v353 = vunpack.c.l.b16 %v297
        %v354 = vpack.c.b16 %v339, %v338
        %v355 = vpack.c.b16 %v341, %v340
        %v356 = vpack.c.b16 %v343, %v342
        %v357 = vpack.c.b16 %v345, %v344
        %v358 = vpack.c.b16 %v347, %v346
        %v359 = vpack.c.b16 %v349, %v348
        %v360 = vpack.c.b16 %v351, %v350
        %v361 = vpack.c.b16 %v353, %v352
        %370 = vmatprep.subr.bf16.mxu0 0
        %371 = vmatpush1.bf16.msra.mxu0 %v314
        %372 = vmatprep.subr.bf16.mxu0 0
        %373 = vmatpush1.bf16.msra.mxu0 %v315
        %374 = vmatprep.subr.bf16.mxu0 0
        %375 = vmatpush1.bf16.msra.mxu0 %v316
        %376 = vmatprep.subr.bf16.mxu0 0
        %377 = vmatpush1.bf16.msra.mxu0 %v317
        %378 = vmatprep.subr.bf16.mxu0 0
        %379 = vmatpush1.bf16.msra.mxu0 %v318
        %380 = vmatprep.subr.bf16.mxu0 0
        %381 = vmatpush1.bf16.msra.mxu0 %v319
        %382 = vmatprep.subr.bf16.mxu0 0
        %383 = vmatpush1.bf16.msra.mxu0 %v320
        %384 = vmatprep.subr.bf16.mxu0 0
        %385 = vmatpush1.bf16.msra.mxu0 %v321
        %386 = vmatprep.subr.bf16.mxu0 0
        %387 = vmatpush1.bf16.msra.mxu0 0
        %388 = vmatprep.subr.bf16.mxu0 0
        %389 = vmatpush1.bf16.msra.mxu0 0
        %390 = vmatprep.subr.bf16.mxu0 0
        %391 = vmatpush1.bf16.msra.mxu0 0
        %392 = vmatprep.subr.bf16.mxu0 0
        %393 = vmatpush1.bf16.msra.mxu0 0
        %394 = vmatprep.subr.bf16.mxu0 0
        %395 = vmatpush1.bf16.msra.mxu0 0
        %396 = vmatprep.subr.bf16.mxu0 0
        %397 = vmatpush1.bf16.msra.mxu0 0
        %398 = vmatprep.subr.bf16.mxu0 0
        %399 = vmatpush1.bf16.msra.mxu0 0
        %400 = vmatprep.subr.bf16.mxu0 0
        %401 = vmatpush1.bf16.msra.mxu0 0
        %402 = vmatprep.mubr.bf16.mxu0 0
        %403 = vmatmul.mubr.bf16.gmra.mrb[0].mxu0 %v354
        %v404 = vpop.f32.mrb[0].mxu0
        %v405 = vadd.f32 0.0, %v404
        %v406 = vpop.f32.mrb[0].mxu0
        %v407 = vpop.f32.mrb[0].mxu0
        %v408 = vadd.f32 0.0, %v407
        %v409 = vpop.f32.mrb[0].mxu0
        %410 = vmatprep.mubr.bf16.mxu0 0
        %411 = vmatmul.mubr.bf16.gmra.mrb[0].mxu0 %v355
        %v412 = vpop.f32.mrb[0].mxu0
        %v413 = vadd.f32 0.0, %v412
        %v414 = vpop.f32.mrb[0].mxu0
        %v415 = vpop.f32.mrb[0].mxu0
        %v416 = vadd.f32 0.0, %v415
        %v417 = vpop.f32.mrb[0].mxu0
        %418 = vmatprep.mubr.bf16.mxu0 0
        %419 = vmatmul.mubr.bf16.gmra.mrb[0].mxu0 %v356
        %v420 = vpop.f32.mrb[0].mxu0
        %v421 = vadd.f32 0.0, %v420
        %v422 = vpop.f32.mrb[0].mxu0
        %v423 = vpop.f32.mrb[0].mxu0
        %v424 = vadd.f32 0.0, %v423
        %v425 = vpop.f32.mrb[0].mxu0
        %426 = vmatprep.mubr.bf16.mxu0 0
        %427 = vmatmul.mubr.bf16.gmra.mrb[0].mxu0 %v357
        %v428 = vpop.f32.mrb[0].mxu0
        %v429 = vadd.f32 0.0, %v428
        %v430 = vpop.f32.mrb[0].mxu0
        %v431 = vpop.f32.mrb[0].mxu0
        %v432 = vadd.f32 0.0, %v431
        %v433 = vpop.f32.mrb[0].mxu0
        %434 = vmatprep.mubr.bf16.mxu0 0
        %435 = vmatmul.mubr.bf16.gmra.mrb[0].mxu0 %v358
        %v436 = vpop.f32.mrb[0].mxu0
        %v437 = vadd.f32 0.0, %v436
        %v438 = vpop.f32.mrb[0].mxu0
        %v439 = vpop.f32.mrb[0].mxu0
        %v440 = vadd.f32 0.0, %v439
        %v441 = vpop.f32.mrb[0].mxu0
        %442 = vmatprep.mubr.bf16.mxu0 0
        %443 = vmatmul.mubr.bf16.gmra.mrb[0].mxu0 %v359
        %v444 = vpop.f32.mrb[0].mxu0
        %v445 = vadd.f32 0.0, %v444
        %v446 = vpop.f32.mrb[0].mxu0
        %v447 = vpop.f32.mrb[0].mxu0
        %v448 = vadd.f32 0.0, %v447
        %v449 = vpop.f32.mrb[0].mxu0
        %450 = vmatprep.mubr.bf16.mxu0 0
        %451 = vmatmul.mubr.bf16.gmra.mrb[0].mxu0 %v360
        %v452 = vpop.f32.mrb[0].mxu0
        %v453 = vadd.f32 0.0, %v452
        %v454 = vpop.f32.mrb[0].mxu0
        %v455 = vpop.f32.mrb[0].mxu0
        %v456 = vadd.f32 0.0, %v455
        %v457 = vpop.f32.mrb[0].mxu0
        %458 = vmatprep.mubr.bf16.mxu0 0
        %459 = vmatmul.mubr.bf16.gmra.mrb[0].mxu0 %v361
        %v460 = vpop.f32.mrb[0].mxu0
        %v461 = vadd.f32 0.0, %v460
        %v462 = vpop.f32.mrb[0].mxu0
        %v463 = vpop.f32.mrb[0].mxu0
        %v464 = vadd.f32 0.0, %v463
        %v465 = vpop.f32.mrb[0].mxu0
        %466 = vdwg.mxu0
        %v467 = vpack.c.bf16 %v408, %v405
        %v468 = vpack.c.bf16 %v416, %v413
        %v469 = vpack.c.bf16 %v424, %v421
        %v470 = vpack.c.bf16 %v432, %v429
        %v471 = vpack.c.bf16 %v440, %v437
        %v472 = vpack.c.bf16 %v448, %v445
        %v473 = vpack.c.bf16 %v456, %v453
        %v474 = vpack.c.bf16 %v464, %v461
        %v475 = vld [vmem:[%s219] sm:$0xf]
        %v476 = vld [vmem:[%s219 + $0x4] sm:$0xf]
        %v477 = vld [vmem:[%s219 + $0x8] sm:$0xf]
        %v478 = vld [vmem:[%s219 + $0xc] sm:$0xf]
        %v479 = vld [vmem:[%s219 + $0x10] sm:$0xf]
        %v480 = vld [vmem:[%s219 + $0x14] sm:$0xf]
        %v481 = vld [vmem:[%s219 + $0x18] sm:$0xf]
        %v482 = vld [vmem:[%s219 + $0x1c] sm:$0xf]
        %v483 = vld [vmem:[%s219 + $0x20] sm:$0xf]
        %v484 = vld [vmem:[%s219 + $0x24] sm:$0xf]
        %v485 = vld [vmem:[%s219 + $0x28] sm:$0xf]
        %v486 = vld [vmem:[%s219 + $0x2c] sm:$0xf]
        %v487 = vld [vmem:[%s219 + $0x30] sm:$0xf]
        %v488 = vld [vmem:[%s219 + $0x34] sm:$0xf]
        %v489 = vld [vmem:[%s219 + $0x38] sm:$0xf]
        %v490 = vld [vmem:[%s219 + $0x3c] sm:$0xf]
        %v491 = vld [vmem:[%s244] sm:$0x1]
        %v493 = vlaneseq
        %v494 = vshrl.u32 %v493, 7
        %v495 = vsub.s32 0, %v494
        %v496 = vrot.slane %v491, %v495
        %v514 = vunpack.c.l.b16 %v475
        %v515 = vunpack.c.l.b16 %v476
        %v516 = vunpack.c.l.b16 %v477
        %v517 = vunpack.c.l.b16 %v478
        %v518 = vunpack.c.l.b16 %v479
        %v519 = vunpack.c.l.b16 %v480
        %v520 = vunpack.c.l.b16 %v481
        %v521 = vunpack.c.l.b16 %v482
        %v522 = vunpack.c.l.b16 %v483
        %v523 = vunpack.c.l.b16 %v484
        %v524 = vunpack.c.l.b16 %v485
        %v525 = vunpack.c.l.b16 %v486
        %v526 = vunpack.c.l.b16 %v487
        %v527 = vunpack.c.l.b16 %v488
        %v528 = vunpack.c.l.b16 %v489
        %v529 = vunpack.c.l.b16 %v490
        %v530 = vpack.c.b16 %v515, %v514
        %v531 = vpack.c.b16 %v517, %v516
        %v532 = vpack.c.b16 %v519, %v518
        %v533 = vpack.c.b16 %v521, %v520
        %v534 = vpack.c.b16 %v523, %v522
        %v535 = vpack.c.b16 %v525, %v524
        %v536 = vpack.c.b16 %v527, %v526
        %v537 = vpack.c.b16 %v529, %v528
        %546 = vmatprep.subr.bf16.mxu0 0
        %547 = vmatpush1.bf16.msra.mxu0 %v530
        %548 = vmatprep.subr.bf16.mxu0 0
        %549 = vmatpush1.bf16.msra.mxu0 %v531
        %550 = vmatprep.subr.bf16.mxu0 0
        %551 = vmatpush1.bf16.msra.mxu0 %v532
        %552 = vmatprep.subr.bf16.mxu0 0
        %553 = vmatpush1.bf16.msra.mxu0 %v533
        %554 = vmatprep.subr.bf16.mxu0 0
        %555 = vmatpush1.bf16.msra.mxu0 %v534
        %556 = vmatprep.subr.bf16.mxu0 0
        %557 = vmatpush1.bf16.msra.mxu0 %v535
        %558 = vmatprep.subr.bf16.mxu0 0
        %559 = vmatpush1.bf16.msra.mxu0 %v536
        %560 = vmatprep.subr.bf16.mxu0 0
        %561 = vmatpush1.bf16.msra.mxu0 %v537
        %562 = vmatprep.subr.bf16.mxu0 0
        %563 = vmatpush1.bf16.msra.mxu0 0
        %564 = vmatprep.subr.bf16.mxu0 0
        %565 = vmatpush1.bf16.msra.mxu0 0
        %566 = vmatprep.subr.bf16.mxu0 0
        %567 = vmatpush1.bf16.msra.mxu0 0
        %568 = vmatprep.subr.bf16.mxu0 0
        %569 = vmatpush1.bf16.msra.mxu0 0
        %570 = vmatprep.subr.bf16.mxu0 0
        %571 = vmatpush1.bf16.msra.mxu0 0
        %572 = vmatprep.subr.bf16.mxu0 0
        %573 = vmatpush1.bf16.msra.mxu0 0
        %574 = vmatprep.subr.bf16.mxu0 0
        %575 = vmatpush1.bf16.msra.mxu0 0
        %576 = vmatprep.subr.bf16.mxu0 0
        %577 = vmatpush1.bf16.msra.mxu0 0
        %578 = vmatprep.mubr.bf16.mxu0 0
        %579 = vmatmul.mubr.bf16.gmra.mrb[0].mxu0 %v467
        %v580 = vpop.f32.mrb[0].mxu0
        %v581 = vadd.f32 %v496, %v580
        %v582 = vpop.f32.mrb[0].mxu0
        %v583 = vpop.f32.mrb[0].mxu0
        %v584 = vadd.f32 %v496, %v583
        %v585 = vpop.f32.mrb[0].mxu0
        %586 = vmatprep.mubr.bf16.mxu0 0
        %587 = vmatmul.mubr.bf16.gmra.mrb[0].mxu0 %v468
        %v588 = vpop.f32.mrb[0].mxu0
        %v589 = vadd.f32 %v496, %v588
        %v590 = vpop.f32.mrb[0].mxu0
        %v591 = vpop.f32.mrb[0].mxu0
        %v592 = vadd.f32 %v496, %v591
        %v593 = vpop.f32.mrb[0].mxu0
        %594 = vmatprep.mubr.bf16.mxu0 0
        %595 = vmatmul.mubr.bf16.gmra.mrb[0].mxu0 %v469
        %v596 = vpop.f32.mrb[0].mxu0
        %v597 = vadd.f32 %v496, %v596
        %v598 = vpop.f32.mrb[0].mxu0
        %v599 = vpop.f32.mrb[0].mxu0
        %v600 = vadd.f32 %v496, %v599
        %v601 = vpop.f32.mrb[0].mxu0
        %602 = vmatprep.mubr.bf16.mxu0 0
        %603 = vmatmul.mubr.bf16.gmra.mrb[0].mxu0 %v470
        %v604 = vpop.f32.mrb[0].mxu0
        %v605 = vadd.f32 %v496, %v604
        %v606 = vpop.f32.mrb[0].mxu0
        %v607 = vpop.f32.mrb[0].mxu0
        %v608 = vadd.f32 %v496, %v607
        %v609 = vpop.f32.mrb[0].mxu0
        %610 = vmatprep.mubr.bf16.mxu0 0
        %611 = vmatmul.mubr.bf16.gmra.mrb[0].mxu0 %v471
        %v612 = vpop.f32.mrb[0].mxu0
        %v613 = vadd.f32 %v496, %v612
        %v614 = vpop.f32.mrb[0].mxu0
        %v615 = vpop.f32.mrb[0].mxu0
        %v616 = vadd.f32 %v496, %v615
        %v617 = vpop.f32.mrb[0].mxu0
        %618 = vmatprep.mubr.bf16.mxu0 0
        %619 = vmatmul.mubr.bf16.gmra.mrb[0].mxu0 %v472
        %v620 = vpop.f32.mrb[0].mxu0
        %v621 = vadd.f32 %v496, %v620
        %v622 = vpop.f32.mrb[0].mxu0
        %v623 = vpop.f32.mrb[0].mxu0
        %v624 = vadd.f32 %v496, %v623
        %v625 = vpop.f32.mrb[0].mxu0
        %626 = vmatprep.mubr.bf16.mxu0 0
        %627 = vmatmul.mubr.bf16.gmra.mrb[0].mxu0 %v473
        %v628 = vpop.f32.mrb[0].mxu0
        %v629 = vadd.f32 %v496, %v628
        %v630 = vpop.f32.mrb[0].mxu0
        %v631 = vpop.f32.mrb[0].mxu0
        %v632 = vadd.f32 %v496, %v631
        %v633 = vpop.f32.mrb[0].mxu0
        %634 = vmatprep.mubr.bf16.mxu0 0
        %635 = vmatmul.mubr.bf16.gmra.mrb[0].mxu0 %v474
        %v636 = vpop.f32.mrb[0].mxu0
        %v637 = vadd.f32 %v496, %v636
        %v638 = vpop.f32.mrb[0].mxu0
        %v639 = vpop.f32.mrb[0].mxu0
        %v640 = vadd.f32 %v496, %v639
        %v641 = vpop.f32.mrb[0].mxu0
        %642 = vdwg.mxu0
        %643 = vst [vmem:[#allocation2] sm:$0xff] %v581
        %644 = vst [vmem:[#allocation2 + $0x8] sm:$0xff] %v584
        %645 = vst [vmem:[#allocation2 + $0x10] sm:$0xff] %v589
        %646 = vst [vmem:[#allocation2 + $0x18] sm:$0xff] %v592
        %647 = vst [vmem:[#allocation2 + $0x20] sm:$0xff] %v597
        %648 = vst [vmem:[#allocation2 + $0x28] sm:$0xff] %v600
        %649 = vst [vmem:[#allocation2 + $0x30] sm:$0xff] %v605
        %650 = vst [vmem:[#allocation2 + $0x38] sm:$0xff] %v608
        %651 = vst [vmem:[#allocation2 + $0x40] sm:$0xff] %v613
        %652 = vst [vmem:[#allocation2 + $0x48] sm:$0xff] %v616
        %653 = vst [vmem:[#allocation2 + $0x50] sm:$0xff] %v621
        %654 = vst [vmem:[#allocation2 + $0x58] sm:$0xff] %v624
        %655 = vst [vmem:[#allocation2 + $0x60] sm:$0xff] %v629
        %656 = vst [vmem:[#allocation2 + $0x68] sm:$0xff] %v632
        %657 = vst [vmem:[#allocation2 + $0x70] sm:$0xff] %v637
        %658 = vst [vmem:[#allocation2 + $0x78] sm:$0xff] %v640
        %p659 = scmp.eq.s32.totalorder %s18, 2
        // Predicated region
        $region53: #{tpu_custom_call.1} parent=35 // pred_check
          %p660 = pneg %p659
        $region54: #{tpu_custom_call.1} parent=35 // pred_check_branch
          %662 = sbr.rel (%p660) target = $region56
        $region55: #{tpu_custom_call.1} parent=35 // pred_region
          %v663 = vmul.f32 %v581, %v581
          %v664 = vmul.f32 %v584, %v584
          %v665 = vmul.f32 %v589, %v589
          %v666 = vmul.f32 %v592, %v592
          %v667 = vmul.f32 %v597, %v597
          %v668 = vmul.f32 %v600, %v600
          %v669 = vmul.f32 %v605, %v605
          %v670 = vmul.f32 %v608, %v608
          %v671 = vmul.f32 %v613, %v613
          %v672 = vmul.f32 %v616, %v616
          %v673 = vmul.f32 %v621, %v621
          %v674 = vmul.f32 %v624, %v624
          %v675 = vmul.f32 %v629, %v629
          %v676 = vmul.f32 %v632, %v632
          %v677 = vmul.f32 %v637, %v637
          %v678 = vmul.f32 %v640, %v640
          %679 = vadd.xlane.f32.xlu0 %v663
          %v680 = vpop.xlane.xlu0 %679
          %681 = vadd.xlane.f32.xlu0 %v664
          %v682 = vpop.xlane.xlu0 %681
          %683 = vadd.xlane.f32.xlu0 %v665
          %v684 = vpop.xlane.xlu0 %683
          %685 = vadd.xlane.f32.xlu0 %v666
          %v686 = vpop.xlane.xlu0 %685
          %687 = vadd.xlane.f32.xlu0 %v667
          %v688 = vpop.xlane.xlu0 %687
          %689 = vadd.xlane.f32.xlu0 %v668
          %v690 = vpop.xlane.xlu0 %689
          %691 = vadd.xlane.f32.xlu0 %v669
          %v692 = vpop.xlane.xlu0 %691
          %693 = vadd.xlane.f32.xlu0 %v670
          %v694 = vpop.xlane.xlu0 %693
          %695 = vadd.xlane.f32.xlu0 %v671
          %v696 = vpop.xlane.xlu0 %695
          %697 = vadd.xlane.f32.xlu0 %v672
          %v698 = vpop.xlane.xlu0 %697
          %699 = vadd.xlane.f32.xlu0 %v673
          %v700 = vpop.xlane.xlu0 %699
          %701 = vadd.xlane.f32.xlu0 %v674
          %v702 = vpop.xlane.xlu0 %701
          %703 = vadd.xlane.f32.xlu0 %v675
          %v704 = vpop.xlane.xlu0 %703
          %705 = vadd.xlane.f32.xlu0 %v676
          %v706 = vpop.xlane.xlu0 %705
          %707 = vadd.xlane.f32.xlu0 %v677
          %v708 = vpop.xlane.xlu0 %707
          %709 = vadd.xlane.f32.xlu0 %v678
          %v710 = vpop.xlane.xlu0 %709
          %v711 = vmax.f32 %v680, 1e-24
          %v712 = vmax.f32 %v682, 1e-24
          %v713 = vmax.f32 %v684, 1e-24
          %v714 = vmax.f32 %v686, 1e-24
          %v715 = vmax.f32 %v688, 1e-24
          %v716 = vmax.f32 %v690, 1e-24
          %v717 = vmax.f32 %v692, 1e-24
          %v718 = vmax.f32 %v694, 1e-24
          %v719 = vmax.f32 %v696, 1e-24
          %v720 = vmax.f32 %v698, 1e-24
          %v721 = vmax.f32 %v700, 1e-24
          %v722 = vmax.f32 %v702, 1e-24
          %v723 = vmax.f32 %v704, 1e-24
          %v724 = vmax.f32 %v706, 1e-24
          %v725 = vmax.f32 %v708, 1e-24
          %v726 = vmax.f32 %v710, 1e-24
          %v727 = vrsqrt.pop %v711
          %v728 = vrsqrt.pop %v712
          %v729 = vrsqrt.pop %v713
          %v730 = vrsqrt.pop %v714
          %v731 = vrsqrt.pop %v715
          %v732 = vrsqrt.pop %v716
          %v733 = vrsqrt.pop %v717
          %v734 = vrsqrt.pop %v718
          %v735 = vrsqrt.pop %v719
          %v736 = vrsqrt.pop %v720
          %v737 = vrsqrt.pop %v721
          %v738 = vrsqrt.pop %v722
          %v739 = vrsqrt.pop %v723
          %v740 = vrsqrt.pop %v724
          %v741 = vrsqrt.pop %v725
          %v742 = vrsqrt.pop %v726
          %v743 = vmul.f32 %v581, %v727
          %v744 = vmul.f32 %v584, %v728
          %v745 = vmul.f32 %v589, %v729
          %v746 = vmul.f32 %v592, %v730
          %v747 = vmul.f32 %v597, %v731
          %v748 = vmul.f32 %v600, %v732
          %v749 = vmul.f32 %v605, %v733
          %v750 = vmul.f32 %v608, %v734
          %v751 = vmul.f32 %v613, %v735
          %v752 = vmul.f32 %v616, %v736
          %v753 = vmul.f32 %v621, %v737
          %v754 = vmul.f32 %v624, %v738
          %v755 = vmul.f32 %v629, %v739
          %v756 = vmul.f32 %v632, %v740
          %v757 = vmul.f32 %v637, %v741
          %v758 = vmul.f32 %v640, %v742
          %759 = vst [vmem:[#allocation9] sm:$0xff] %v743
          %760 = vst [vmem:[#allocation9 + $0x8] sm:$0xff] %v744
          %761 = vst [vmem:[#allocation9 + $0x10] sm:$0xff] %v745
          %762 = vst [vmem:[#allocation9 + $0x18] sm:$0xff] %v746
          %763 = vst [vmem:[#allocation9 + $0x20] sm:$0xff] %v747
          %764 = vst [vmem:[#allocation9 + $0x28] sm:$0xff] %v748
          %765 = vst [vmem:[#allocation9 + $0x30] sm:$0xff] %v749
          %766 = vst [vmem:[#allocation9 + $0x38] sm:$0xff] %v750
          %767 = vst [vmem:[#allocation9 + $0x40] sm:$0xff] %v751
          %768 = vst [vmem:[#allocation9 + $0x48] sm:$0xff] %v752
          %769 = vst [vmem:[#allocation9 + $0x50] sm:$0xff] %v753
          %770 = vst [vmem:[#allocation9 + $0x58] sm:$0xff] %v754
          %771 = vst [vmem:[#allocation9 + $0x60] sm:$0xff] %v755
          %772 = vst [vmem:[#allocation9 + $0x68] sm:$0xff] %v756
          %773 = vst [vmem:[#allocation9 + $0x70] sm:$0xff] %v757
          %774 = vst [vmem:[#allocation9 + $0x78] sm:$0xff] %v758
        $region56: #{tpu_custom_call.1} parent=35 // pred_fallthru
          _
        // Predicated region
        $region57: #{tpu_custom_call.1} parent=35 // pred_check
          %p775 = pneg %p125
        $region58: #{tpu_custom_call.1} parent=35 // pred_check_branch
          %777 = sbr.rel (%p775) target = $region60
        $region59: #{tpu_custom_call.1} parent=35 // pred_region
          %s779 = ssub.s32 2048, 2048
          %780 = vsyncadd [#allocation5], %s779
          %s781 = sshll.u32 [#allocation9], 4
          %s782 = int_to_ptr.vmem [resolvable:$true] %s781
          %787 = dma.vmem_to_hbm [thread:$0]  %s782, 2048, %s4, [#allocation5], 128, 128, 8
        $region60: #{tpu_custom_call.1} parent=35 // pred_fallthru
          _
        // Predicated region
        $region61: #{tpu_custom_call.1} parent=35 // pred_check
          %p788 = pneg %p125
        $region62: #{tpu_custom_call.1} parent=35 // pred_check_branch
          %790 = sbr.rel (%p788) target = $region64
        $region63: #{tpu_custom_call.1} parent=35 // pred_region
          %791 = dma.done [#allocation5], 2048
        $region64: #{tpu_custom_call.1} parent=35 // pred_fallthru
          _
      $region36: #{tpu_custom_call.1} parent=5 // pred_fallthru
        _
      %p792 = scmp.le.s32.totalorder 2, %s13
      // Predicated region
      $region65: #{tpu_custom_call.1} parent=5 // pred_check
        %p793 = pneg %p792
      $region66: #{tpu_custom_call.1} parent=5 // pred_check_branch
        %795 = sbr.rel (%p793) target = $region68
      $region67: #{tpu_custom_call.1} parent=5 // pred_region
        %s796 = ssub.s32 %s13, 2
      $region68: #{tpu_custom_call.1} parent=5 // pred_fallthru
        _
    $region6: #{tpu_custom_call.1} parent=1 // loop_footer
      %s17 = sadd.s32 1, %s13
    $region7: #{tpu_custom_call.1} parent=1 // loop_footer_branch
      %12 = sbr.rel target = $region3
    $region8: #{tpu_custom_call.1} parent=1 // loop_exit
      _
    %797 = vsyncpa [#allocation4], 1
    %s798 = scalar_lea.sflag [#allocation4], 1
    %799 = vsyncpa %s798, 1
    %800 = vsyncpa [#allocation7], 1
    %801 = vsyncpa [#allocation5], 1
    %s802 = scalar_lea.sflag [#allocation5], 1
    %803 = vsyncpa %s802, 1

</llo_original>
